<compile_context>
chip_gen: v5e
topology: v5e:2x2
jax: 0.10.0
libtpu: 0.0.40
codegen_flags: <defaults>
</compile_context>

<pallas_src>
import jax
import jax.numpy as jnp
from jax.experimental import pallas as pl
from jax.experimental.pallas import tpu as pltpu


def glu_kernel(a_ref, b_ref, o_ref):
    # Pure elementwise hot path on a lane-dense VMEM tile: out = a * sigmoid(b).
    # (HBM-bandwidth-bound; sigmoid's exp/recip go to the EUP slot for free.)
    o_ref[...] = a_ref[...] * jax.nn.sigmoid(b_ref[...])


def _pick_lane_tile(L, cap=2048):
    """Largest multiple of 128 that divides L (<= cap); else the full extent.

    The reshape below makes this the array's last dim, so any returned value
    is a legal (full-extent) block width even when L % 128 != 0.
    """
    t = min(cap, L)
    t -= t % 128
    while t >= 128:
        if L % t == 0:
            return t
        t -= 128
    return L


def _pick_sublane_tile(R, TL, itemsize, target_bytes=1 << 20):
    """Row-block so one block is ~target_bytes; multiple of the packed sublane count."""
    sub = {4: 8, 2: 16, 1: 32}.get(itemsize, 8)
    tm = max(1, target_bytes // (TL * itemsize))
    if tm >= R:
        return R                          # full extent -> always a legal block dim
    tm = max(sub, (tm // sub) * sub)      # keep it a multiple of the sublane pack
    return min(tm, R)


def glu(x):
    """GLU over channel axis of an NCHW tensor: x[:, :C//2] * sigmoid(x[:, C//2:])."""
    N, C, H, W = x.shape
    assert C % 2 == 0, "channels dont divide 2!"
    nc = C // 2
    L = nc * H * W                        # contiguous per-batch half size
    itemsize = jnp.dtype(x.dtype).itemsize

    TL = _pick_lane_tile(L)
    R = L // TL
    TM = _pick_sublane_tile(R, TL, itemsize)

    # Free (metadata-only) reshape: batch row n = [a-half | b-half], each half
    # viewed as an (R, TL) lane-dense slab.
    x4 = x.reshape(N, 2, R, TL)

    grid = (N, pl.cdiv(R, TM))

    out3d = pl.pallas_call(
        glu_kernel,
        out_shape=jax.ShapeDtypeStruct((N, R, TL), x.dtype),
        grid_spec=pl.GridSpec(
            grid=grid,
            in_specs=[
                # Two views of the SAME array (passed twice, no HBM copy):
                # the gate half differs only by the +1 offset on the half axis.
                pl.BlockSpec((None, None, TM, TL), lambda n, r: (n, 0, r, 0)),
                pl.BlockSpec((None, None, TM, TL), lambda n, r: (n, 1, r, 0)),
            ],
            out_specs=pl.BlockSpec((None, TM, TL), lambda n, r: (n, r, 0)),
        ),
        compiler_params=pltpu.CompilerParams(
            # Both grid axes are independent -> shard across TensorCores (v7x).
            dimension_semantics=("parallel", "parallel"),
        ),
    )(x4, x4)

    return out3d.reshape(N, nc, H, W)


def _reference(x):
    nc = x.shape[1] // 2
    return x[:, :nc] * jax.nn.sigmoid(x[:, nc:])


if __name__ == "__main__":
    key = jax.random.PRNGKey(0)

    # Primary shape implied by the module (small NCHW example).
    x = jax.random.normal(key, (2, 4, 16, 16), dtype=jnp.float32)
    out = jax.block_until_ready(glu(x))
    assert out.shape == (2, 2, 16, 16)
    assert jnp.allclose(out, _reference(x), atol=1e-6, rtol=1e-6)

    # Extra small shapes to exercise the non-128-divisible and multi-row paths.
    for shape in [(2, 8, 14, 14), (2, 16, 32, 32)]:
        xi = jax.random.normal(jax.random.PRNGKey(1), shape, dtype=jnp.float32)
        oi = jax.block_until_ready(glu(xi))
        assert jnp.allclose(oi, _reference(xi), atol=1e-6, rtol=1e-6)

    print("KERNEL_OK")
</pallas_src>

<mosaic_0001>
module attributes {stable_mosaic.version = 11 : i64} {
  func.func @glu_kernel(%arg0: i32, %arg1: i32, %arg2: memref<1x1x1x512xf32, #tpu.memory_space<vmem>>, %arg3: memref<1x1x1x512xf32, #tpu.memory_space<vmem>>, %arg4: memref<1x1x512xf32, #tpu.memory_space<vmem>>) attributes {dimension_semantics = [#tpu.dimension_semantics<parallel>, #tpu.dimension_semantics<parallel>], iteration_bounds = array<i64: 2, 1>, scalar_prefetch = 0 : i64, scratch_operands = 0 : i64, tpu.core_type = #tpu.core_type<tc>, window_params = [{transform_indices = @transform_0, window_bounds = array<i64: 1, 1, 1, 512>}, {transform_indices = @transform_1, window_bounds = array<i64: 1, 1, 1, 512>}, {transform_indices = @transform_2, window_bounds = array<i64: 1, 1, 512>}]} {
    %c0 = arith.constant 0 : index
    %c0_0 = arith.constant 0 : index
    %c0_1 = arith.constant 0 : index
    %c0_2 = arith.constant 0 : index
    %0 = vector.load %arg2[%c0, %c0_0, %c0_1, %c0_2] : memref<1x1x1x512xf32, #tpu.memory_space<vmem>>, vector<1x1x1x512xf32>
    %1 = vector.shape_cast %0 : vector<1x1x1x512xf32> to vector<1x512xf32>
    %c0_3 = arith.constant 0 : index
    %c0_4 = arith.constant 0 : index
    %c0_5 = arith.constant 0 : index
    %c0_6 = arith.constant 0 : index
    %2 = vector.load %arg3[%c0_3, %c0_4, %c0_5, %c0_6] : memref<1x1x1x512xf32, #tpu.memory_space<vmem>>, vector<1x1x1x512xf32>
    %3 = vector.shape_cast %2 : vector<1x1x1x512xf32> to vector<1x512xf32>
    %4 = arith.negf %3 : vector<1x512xf32>
    %5 = math.exp %4 : vector<1x512xf32>
    %cst = arith.constant 1.000000e+00 : f32
    %6 = vector.broadcast %cst : f32 to vector<1x512xf32>
    %7 = arith.addf %6, %5 : vector<1x512xf32>
    %8 = arith.divf %6, %7 : vector<1x512xf32>
    %9 = arith.mulf %1, %8 : vector<1x512xf32>
    %c0_7 = arith.constant 0 : index
    %c0_8 = arith.constant 0 : index
    %c0_9 = arith.constant 0 : index
    %10 = vector.load %arg4[%c0_7, %c0_8, %c0_9] : memref<1x1x512xf32, #tpu.memory_space<vmem>>, vector<1x1x512xf32>
    %11 = vector.shape_cast %10 : vector<1x1x512xf32> to vector<1x512xf32>
    %12 = vector.shape_cast %9 : vector<1x512xf32> to vector<1x1x512xf32>
    tpu.vector_store %arg4[%c0_7, %c0_8, %c0_9], %12 {strides = array<i32>} : memref<1x1x512xf32, #tpu.memory_space<vmem>>, vector<1x1x512xf32>,
    return
  }
  func.func @transform_0(%arg0: i32, %arg1: i32) -> (i32, i32, i32, i32) {
    %c0_i32 = arith.constant 0 : i32
    %c0_i32_0 = arith.constant 0 : i32
    %c0_i32_1 = arith.constant 0 : i32
    return %arg0, %c0_i32, %arg1, %c0_i32_0 : i32, i32, i32, i32
  }
  func.func @transform_1(%arg0: i32, %arg1: i32) -> (i32, i32, i32, i32) {
    %c1_i32 = arith.constant 1 : i32
    %c0_i32 = arith.constant 0 : i32
    %c0_i32_0 = arith.constant 0 : i32
    return %arg0, %c1_i32, %arg1, %c0_i32 : i32, i32, i32, i32
  }
  func.func @transform_2(%arg0: i32, %arg1: i32) -> (i32, i32, i32) {
    %c0_i32 = arith.constant 0 : i32
    %c0_i32_0 = arith.constant 0 : i32
    return %arg0, %arg1, %c0_i32 : i32, i32, i32
  }
}

</mosaic_0001>

<llo_original>
// kernel: tpu_custom_call.1
$region0: #{tpu_custom_call.1}
  #allocation0 [shape = 'u32[]', space=smem, size = 0x4, offset = 0x4, fixed_abs, tag = 'smem constant byte address 0x4 - core index']
  #allocation1 [shape = 'u32[72,128]{1,0:T(1,128)}', space=vmem, size = 0x9000, scoped, tag = 'internal scratch']
  %s0 = inlined_call_operand.hbm [shape: f32[2,2,1,512], index: 0, kind: input, shape index: {}]
  %s1 = inlined_call_operand.hbm [shape: f32[2,2,1,512], index: 1, kind: input, shape index: {}]
  %s2 = inlined_call_operand.hbm [shape: f32[2,1,512], index: 2, kind: output, shape index: {}]
  %s3 = sld [smem:[#allocation0]]
  $region49: #{tpu_custom_call.1} parent=0
    _
  %s5 = ssub.s32 1, %s3
  %s6 = scalar_select 0, %s5, %s3
  $region1: #{tpu_custom_call.1} parent=0
    #allocation2 [shape = 'u8[4096]{0}', space=vmem, size = 0x1000, scoped, tag = 'input window, operand 0']
    #allocation3 [shape = 's32[2]{0}', space=sflag, size = 0x8, scoped, tag = 'scoped memory for tpu_custom_call.1']
    #allocation4 [shape = 's32[2]{0}', space=sflag, size = 0x8, scoped, tag = 'scoped memory for tpu_custom_call.1']
    #allocation5 [shape = 'u8[4096]{0}', space=vmem, size = 0x1000, scoped, tag = 'input window, operand 1']
    #allocation6 [shape = 's32[2]{0}', space=sflag, size = 0x8, scoped, tag = 'scoped memory for tpu_custom_call.1']
    #allocation7 [shape = 'u8[4096]{0}', space=vmem, size = 0x1000, scoped, tag = 'output window, operand 0']
    %7 = vsyncpa [#allocation3], 0
    %s8 = scalar_lea.sflag [#allocation3], 1
    %9 = vsyncpa %s8, 0
    %10 = vsyncpa [#allocation6], 0
    %s11 = scalar_lea.sflag [#allocation6], 1
    %12 = vsyncpa %s11, 0
    %13 = vsyncpa [#allocation4], 0
    %s14 = scalar_lea.sflag [#allocation4], 1
    %15 = vsyncpa %s14, 0
    loop: start=0, step=1, limit=4
    $region2: #{tpu_custom_call.1} parent=1 // loop_pre_header
      _
    $region3: #{tpu_custom_call.1} parent=1 // loop_header
      %s17 = sphi 0, %s21
      %p18 = scmp.ge.s32.totalorder %s17, 4
      %s24 = sphi 0, %s36
      %s25 = sphi 0, %s32
      %s26 = sphi 0, %s24
      %s27 = sphi 0, %s25
      %s28 = sphi 0, %s26
      %s29 = sphi 0, %s27
      %s41 = sphi 0, %s43
      %s44 = sphi 0, %s41
      %s45 = sphi 0, %s44
      %s61 = sphi 0, %s45
      %s69 = sphi 0, %s71
      %s72 = sphi 0, %s69
      %s73 = sphi 0, %s72
      %s89 = sphi 0, %s73
      %s97 = sphi 0, %s99
      %s100 = sphi 0, %s97
      %s101 = sphi 0, %s100
      %s117 = sphi 0, %s101
    $region4: #{tpu_custom_call.1} parent=1 // loop_header_branch
      %20 = sbr.rel (%p18) target = $region8
    $region5: #{tpu_custom_call.1} parent=1 // loop_body
      %s22 = ssub.s32 %s17, 1
      %s23 = ssub.s32 %s17, 2
      %s30 = sadd.s32 1, %s25
      %p31 = scmp.ge.s32.totalorder %s30, 1
      %s32 = scalar_select %p31, 0, %s30
      %s33 = sadd.s32 1, %s24
      %s34 = scalar_select %p31, %s33, %s24
      %p35 = scmp.ge.s32.totalorder %s34, 2
      %s36 = scalar_select %p35, 0, %s34
      %s37 = ssub.s32 %s24, %s36
      %s38 = ssub.s32 %s25, %s32
      %s39 = sor.u32 %s37, %s38
      %p40 = scmp.eq.s32.totalorder %s39, 0
      %s42 = sadd.s32 %s41, 1
      %s43 = scalar_select %p40, %s41, %s42
      %p46 = pneg %p40
      %p47 = scmp.eq.s32.totalorder %s17, 1
      %p48 = por %p46, %p47
      %p49 = scmp.ne.s32.totalorder %s41, %s44
      %p50 = scmp.eq.s32.totalorder %s17, 0
      %p51 = por %p49, %p50
      %p52 = scmp.ne.s32.totalorder %s41, %s44
      %p53 = scmp.eq.s32.totalorder %s22, 1
      %p54 = por %p52, %p53
      %p55 = scmp.ne.s32.totalorder %s44, %s45
      %p56 = scmp.eq.s32.totalorder %s22, 0
      %p57 = por %p55, %p56
      %p58 = scmp.ne.s32.totalorder %s44, %s45
      %p59 = scmp.eq.s32.totalorder %s23, 1
      %p60 = por %p58, %p59
      %p62 = scmp.ne.s32.totalorder %s45, %s61
      %p63 = scmp.eq.s32.totalorder %s23, 0
      %p64 = por %p62, %p63
      %s65 = ssub.s32 %s24, %s36
      %s66 = ssub.s32 %s25, %s32
      %s67 = sor.u32 %s65, %s66
      %p68 = scmp.eq.s32.totalorder %s67, 0
      %s70 = sadd.s32 %s69, 1
      %s71 = scalar_select %p68, %s69, %s70
      %p74 = pneg %p68
      %p75 = scmp.eq.s32.totalorder %s17, 1
      %p76 = por %p74, %p75
      %p77 = scmp.ne.s32.totalorder %s69, %s72
      %p78 = scmp.eq.s32.totalorder %s17, 0
      %p79 = por %p77, %p78
      %p80 = scmp.ne.s32.totalorder %s69, %s72
      %p81 = scmp.eq.s32.totalorder %s22, 1
      %p82 = por %p80, %p81
      %p83 = scmp.ne.s32.totalorder %s72, %s73
      %p84 = scmp.eq.s32.totalorder %s22, 0
      %p85 = por %p83, %p84
      %p86 = scmp.ne.s32.totalorder %s72, %s73
      %p87 = scmp.eq.s32.totalorder %s23, 1
      %p88 = por %p86, %p87
      %p90 = scmp.ne.s32.totalorder %s73, %s89
      %p91 = scmp.eq.s32.totalorder %s23, 0
      %p92 = por %p90, %p91
      %s93 = ssub.s32 %s24, %s36
      %s94 = ssub.s32 %s25, %s32
      %s95 = sor.u32 %s93, %s94
      %p96 = scmp.eq.s32.totalorder %s95, 0
      %s98 = sadd.s32 %s97, 1
      %s99 = scalar_select %p96, %s97, %s98
      %p102 = pneg %p96
      %p103 = scmp.eq.s32.totalorder %s17, 1
      %p104 = por %p102, %p103
      %p105 = scmp.ne.s32.totalorder %s97, %s100
      %p106 = scmp.eq.s32.totalorder %s17, 0
      %p107 = por %p105, %p106
      %p108 = scmp.ne.s32.totalorder %s97, %s100
      %p109 = scmp.eq.s32.totalorder %s22, 1
      %p110 = por %p108, %p109
      %p111 = scmp.ne.s32.totalorder %s100, %s101
      %p112 = scmp.eq.s32.totalorder %s22, 0
      %p113 = por %p111, %p112
      %p114 = scmp.ne.s32.totalorder %s100, %s101
      %p115 = scmp.eq.s32.totalorder %s23, 1
      %p116 = por %p114, %p115
      %p118 = scmp.ne.s32.totalorder %s101, %s117
      %p119 = scmp.eq.s32.totalorder %s23, 0
      %p120 = por %p118, %p119
      %p121 = scmp.le.s32.totalorder 1, %s17
      %p122 = scmp.lt.s32.totalorder %s17, 3
      %p123 = pnand %p121, %p122
      %p124 = pneg %p123
      // Predicated region
      $region9: #{tpu_custom_call.1} parent=5 // pred_check
        _
      $region10: #{tpu_custom_call.1} parent=5 // pred_check_branch
        %126 = sbr.rel (%p123) target = $region12
      $region11: #{tpu_custom_call.1} parent=5 // pred_region
        %s127 = ssub.s32 %s17, 1
      $region12: #{tpu_custom_call.1} parent=5 // pred_fallthru
        _
      %p128 = scmp.lt.s32.totalorder %s17, 2
      // Predicated region
      $region13: #{tpu_custom_call.1} parent=5 // pred_check
        %p129 = pneg %p128
      $region14: #{tpu_custom_call.1} parent=5 // pred_check_branch
        %131 = sbr.rel (%p129) target = $region16
      $region15: #{tpu_custom_call.1} parent=5 // pred_region
        // Predicated region
        $region17: #{tpu_custom_call.1} parent=15 // pred_check
          %p132 = pneg %p51
        $region18: #{tpu_custom_call.1} parent=15 // pred_check_branch
          %134 = sbr.rel (%p132) target = $region20
        $region19: #{tpu_custom_call.1} parent=15 // pred_region
          %s135 = sand.u32 %s41, 1
          %s136 = scalar_lea.sflag [#allocation3], %s135
          %s137 = sand.u32 %s41, 1
          %s138 = smul.addr %s137, 4
          %s139 = scalar_lea.vmem [#allocation2], %s138
          %141 = vsyncadd %s136, 0
          %s142 = smul.addr %s25, 4
          %s143 = smul.addr %s24, 8
          %s144 = sadd.s32 %s142, %s143
          %s145 = scalar_lea.hbm %s0, %s144
          %s147 = sshll.u32 %s145, 4
          %s148 = int_to_ptr.hbm [resolvable:$true] %s147
          %s149 = sshll.u32 %s139, 4
          %s150 = int_to_ptr.vmem [resolvable:$true] %s149
          %152 = dma.hbm_to_vmem [thread:$0]  %s148, 64, %s150, %s136
        $region20: #{tpu_custom_call.1} parent=15 // pred_fallthru
          _
        // Predicated region
        $region21: #{tpu_custom_call.1} parent=15 // pred_check
          %p153 = pneg %p79
        $region22: #{tpu_custom_call.1} parent=15 // pred_check_branch
          %155 = sbr.rel (%p153) target = $region24
        $region23: #{tpu_custom_call.1} parent=15 // pred_region
          %s156 = sand.u32 %s69, 1
          %s157 = scalar_lea.sflag [#allocation6], %s156
          %s158 = sand.u32 %s69, 1
          %s159 = smul.addr %s158, 4
          %s160 = scalar_lea.vmem [#allocation5], %s159
          %162 = vsyncadd %s157, 0
          %s163 = smul.addr %s25, 4
          %s164 = sadd.s32 %s163, 4
          %s165 = smul.addr %s24, 8
          %s166 = sadd.s32 %s164, %s165
          %s167 = scalar_lea.hbm %s1, %s166
          %s169 = sshll.u32 %s167, 4
          %s170 = int_to_ptr.hbm [resolvable:$true] %s169
          %s171 = sshll.u32 %s160, 4
          %s172 = int_to_ptr.vmem [resolvable:$true] %s171
          %174 = dma.hbm_to_vmem [thread:$0]  %s170, 64, %s172, %s157
        $region24: #{tpu_custom_call.1} parent=15 // pred_fallthru
          _
      $region16: #{tpu_custom_call.1} parent=5 // pred_fallthru
        _
      %p175 = scmp.le.s32.totalorder 1, %s17
      %p176 = scmp.lt.s32.totalorder %s17, 3
      %p177 = pnand %p175, %p176
      %p178 = pneg %p177
      // Predicated region
      $region25: #{tpu_custom_call.1} parent=5 // pred_check
        _
      $region26: #{tpu_custom_call.1} parent=5 // pred_check_branch
        %180 = sbr.rel (%p177) target = $region28
      $region27: #{tpu_custom_call.1} parent=5 // pred_region
        %s181 = ssub.s32 %s17, 1
        %s182 = sand.u32 %s44, 1
        %s183 = scalar_lea.sflag [#allocation3], %s182
        %s184 = sand.u32 %s44, 1
        %s185 = smul.addr %s184, 4
        %s186 = scalar_lea.vmem [#allocation2], %s185
        // Predicated region
        $region29: #{tpu_custom_call.1} parent=27 // pred_check
          %p187 = pneg %p57
        $region30: #{tpu_custom_call.1} parent=27 // pred_check_branch
          %189 = sbr.rel (%p187) target = $region32
        $region31: #{tpu_custom_call.1} parent=27 // pred_region
          %191 = dma.done %s183, 64
        $region32: #{tpu_custom_call.1} parent=27 // pred_fallthru
          _
        %s192 = sand.u32 %s72, 1
        %s193 = scalar_lea.sflag [#allocation6], %s192
        %s194 = sand.u32 %s72, 1
        %s195 = smul.addr %s194, 4
        %s196 = scalar_lea.vmem [#allocation5], %s195
        // Predicated region
        $region33: #{tpu_custom_call.1} parent=27 // pred_check
          %p197 = pneg %p85
        $region34: #{tpu_custom_call.1} parent=27 // pred_check_branch
          %199 = sbr.rel (%p197) target = $region36
        $region35: #{tpu_custom_call.1} parent=27 // pred_region
          %201 = dma.done %s193, 64
        $region36: #{tpu_custom_call.1} parent=27 // pred_fallthru
          _
        %s202 = sand.u32 %s44, 1
        %s203 = scalar_lea.sflag [#allocation3], %s202
        %s204 = sand.u32 %s44, 1
        %s205 = smul.addr %s204, 4
        %s206 = scalar_lea.vmem [#allocation2], %s205
        %p207 = pneg %p57
        %p208 = pneg %p54
        %s209 = sand.u32 %s72, 1
        %s210 = scalar_lea.sflag [#allocation6], %s209
        %s211 = sand.u32 %s72, 1
        %s212 = smul.addr %s211, 4
        %s213 = scalar_lea.vmem [#allocation5], %s212
        %p214 = pneg %p85
        %p215 = pneg %p82
        %p216 = pneg %p113
        %p217 = pneg %p110
        %s218 = sand.u32 %s100, 1
        %s219 = scalar_lea.sflag [#allocation4], %s218
        %s220 = sand.u32 %s100, 1
        %s221 = smul.addr %s220, 4
        %s222 = scalar_lea.vmem [#allocation7], %s221
        %v223 = vld [vmem:[%s186] sm:$0xf]
        %v224 = vld [vmem:[%s196] sm:$0xf]
        %v225 = vxor.u32 %v224, 2147483648
        %v226 = vmul.f32 %v225, 1.442695
        %v227 = vpow.pop %v226
        %v228 = vadd.f32 %v227, 1.0
        %v229 = vrcp.pop %v228
        %v230 = vmul.f32 %v228, %v229
        %v231 = vsub.f32 1.0, %v230
        %v232 = vmul.f32 %v229, %v231
        %v233 = vadd.f32 %v229, %v232
        %vm234 = vweird.f32 %v228
        %vm235 = vweird.f32 %v229
        %vm236 = vmor %vm234, %vm235
        %v237 = vsel %vm236, %v229, %v233
        %v238 = vand.u32 2147483647, %v228
        %vm239 = vcmp.eq.f32.partialorder %v238, 8.507059e+37
        %v240 = vand.u32 %v228, 2147483648
        %v241 = vor.u32 1.1754944e-38, %v240
        %v242 = vsel %vm239, %v241, %v237
        %v243 = vmul.f32 1.0, %v242
        %v244 = vmul.f32 %v223, %v243
        %v245 = vlaneseq
        %vm246 = vcmp.ge.s32.totalorder %v245, 0
        %vm247 = vcmp.lt.s32.totalorder %v245, 512
        %vm248 = vmand %vm246, %vm247
        %249 = vst.msk [vmem:[%s222] sm:$0xf] %vm248, %v244
        %s250 = sand.u32 %s100, 1
        %s251 = scalar_lea.sflag [#allocation4], %s250
        %s252 = sand.u32 %s100, 1
        %s253 = smul.addr %s252, 4
        %s254 = scalar_lea.vmem [#allocation7], %s253
        // Predicated region
        $region37: #{tpu_custom_call.1} parent=27 // pred_check
          %p255 = pneg %p110
        $region38: #{tpu_custom_call.1} parent=27 // pred_check_branch
          %257 = sbr.rel (%p255) target = $region40
        $region39: #{tpu_custom_call.1} parent=27 // pred_region
          %259 = vsyncadd %s251, 0
          %s260 = smul.addr %s27, 4
          %s261 = smul.addr %s26, 4
          %s262 = sadd.s32 %s260, %s261
          %s263 = scalar_lea.hbm %s2, %s262
          %s265 = sshll.u32 %s254, 4
          %s266 = int_to_ptr.vmem [resolvable:$true] %s265
          %s267 = sshll.u32 %s263, 4
          %s268 = int_to_ptr.hbm [resolvable:$true] %s267
          %270 = dma.vmem_to_hbm [thread:$0]  %s266, 64, %s268, %s251
        $region40: #{tpu_custom_call.1} parent=27 // pred_fallthru
          _
      $region28: #{tpu_custom_call.1} parent=5 // pred_fallthru
        _
      %p271 = scmp.le.s32.totalorder 2, %s17
      // Predicated region
      $region41: #{tpu_custom_call.1} parent=5 // pred_check
        %p272 = pneg %p271
      $region42: #{tpu_custom_call.1} parent=5 // pred_check_branch
        %274 = sbr.rel (%p272) target = $region44
      $region43: #{tpu_custom_call.1} parent=5 // pred_region
        %s275 = ssub.s32 %s17, 2
        // Predicated region
        $region45: #{tpu_custom_call.1} parent=43 // pred_check
          %p276 = pneg %p116
        $region46: #{tpu_custom_call.1} parent=43 // pred_check_branch
          %278 = sbr.rel (%p276) target = $region48
        $region47: #{tpu_custom_call.1} parent=43 // pred_region
          %s279 = sand.u32 %s101, 1
          %s280 = scalar_lea.sflag [#allocation4], %s279
          %s281 = sand.u32 %s101, 1
          %s282 = smul.addr %s281, 4
          %s283 = scalar_lea.vmem [#allocation7], %s282
          %285 = dma.done %s280, 64
        $region48: #{tpu_custom_call.1} parent=43 // pred_fallthru
          _
      $region44: #{tpu_custom_call.1} parent=5 // pred_fallthru
        _
    $region6: #{tpu_custom_call.1} parent=1 // loop_footer
      %s21 = sadd.s32 1, %s17
    $region7: #{tpu_custom_call.1} parent=1 // loop_footer_branch
      %16 = sbr.rel target = $region3
    $region8: #{tpu_custom_call.1} parent=1 // loop_exit
      _
    %286 = vsyncpa [#allocation3], 1
    %s287 = scalar_lea.sflag [#allocation3], 1
    %288 = vsyncpa %s287, 1
    %289 = vsyncpa [#allocation6], 1
    %s290 = scalar_lea.sflag [#allocation6], 1
    %291 = vsyncpa %s290, 1
    %292 = vsyncpa [#allocation4], 1
    %s293 = scalar_lea.sflag [#allocation4], 1
    %294 = vsyncpa %s293, 1

</llo_original>
